<compile_context>
chip_gen: v5e
topology: v5e:2x2
jax: 0.10.0
libtpu: 0.0.40
codegen_flags: <defaults>
</compile_context>

<pallas_src>
import functools

import jax
import jax.numpy as jnp
import numpy as np
from jax.experimental import pallas as pl
from jax.experimental.pallas import tpu as pltpu

BN_EPS = 1e-5
_LANE = 128
_TM_MAX = 512                      # row tile; safe for v7x 64 MiB VMEM
_VMEM_LIMIT = 32 * 1024 * 1024


def _round_up(x, m):
    return ((x + m - 1) // m) * m


def _trans_b_dot(a, b):
    """a[M,K] @ b[N,K]^T via native trans_b MXU form (no in-kernel transpose)."""
    return jax.lax.dot_general(
        a, b, dimension_numbers=(((1,), (1,)), ((), ())),
        preferred_element_type=jnp.float32)


# ---------------------------------------------------------------------------
# Kernels
# ---------------------------------------------------------------------------
def _first_layer_kernel(x_ref, w_ref, y_ref, sum_ref, sq_ref):
    """y = x @ W1^T ; accumulate per-feature sum / sumsq for BN1 stats."""
    @pl.when(pl.program_id(0) == 0)
    def _init():
        sum_ref[...] = jnp.zeros_like(sum_ref)
        sq_ref[...] = jnp.zeros_like(sq_ref)

    y = _trans_b_dot(x_ref[...].astype(jnp.bfloat16), w_ref[...])
    y_ref[...] = y.astype(y_ref.dtype)
    # Zero-padded rows/cols of x contribute nothing -> stats stay exact.
    sum_ref[...] += jnp.sum(y, axis=0, keepdims=True)
    sq_ref[...] += jnp.sum(y * y, axis=0, keepdims=True)


def _mid_layer_kernel(y_in_ref, scale_ref, shift_ref, w_ref,
                      y_ref, sum_ref, sq_ref, *, n_rows, n_pad, tm):
    """h = relu(y_in * scale + shift); y = h @ W^T; accumulate next BN stats."""
    @pl.when(pl.program_id(0) == 0)
    def _init():
        sum_ref[...] = jnp.zeros_like(sum_ref)
        sq_ref[...] = jnp.zeros_like(sq_ref)

    h = y_in_ref[...].astype(jnp.float32)
    h = jnp.maximum(h * scale_ref[...] + shift_ref[...], 0.0)
    if n_pad != n_rows:
        # Mask padded rows so they don't pollute the next layer's batch stats.
        rows = pl.program_id(0) * tm + jax.lax.broadcasted_iota(
            jnp.int32, h.shape, 0)
        h = jnp.where(rows < n_rows, h, 0.0)

    y = _trans_b_dot(h.astype(jnp.bfloat16), w_ref[...])
    y_ref[...] = y.astype(y_ref.dtype)
    sum_ref[...] += jnp.sum(y, axis=0, keepdims=True)
    sq_ref[...] += jnp.sum(y * y, axis=0, keepdims=True)


def _final_layer_kernel(y_in_ref, scale_ref, shift_ref, w_ref, bias_ref, o_ref):
    """out = relu(y_in * scale + shift) @ W4^T + bias (lane-dense padded)."""
    h = y_in_ref[...].astype(jnp.float32)
    h = jnp.maximum(h * scale_ref[...] + shift_ref[...], 0.0)
    out = _trans_b_dot(h.astype(jnp.bfloat16), w_ref[...])
    o_ref[...] = (out + bias_ref[...]).astype(o_ref.dtype)


# ---------------------------------------------------------------------------
# Wrapper
# ---------------------------------------------------------------------------
def _linear_stats_call(kernel_fn, inputs, in_specs, n_pad, tm, f_out,
                       flops, bytes_acc):
    """One (Linear [+BN/ReLU on input]) layer with pinned stats accumulators."""
    return pl.pallas_call(
        kernel_fn,
        grid=(n_pad // tm,),
        in_specs=in_specs,
        out_specs=(
            pl.BlockSpec((tm, f_out), lambda i: (i, 0)),    # pre-activations
            pl.BlockSpec((1, f_out), lambda i: (0, 0)),     # sum accumulator
            pl.BlockSpec((1, f_out), lambda i: (0, 0)),     # sumsq accumulator
        ),
        out_shape=(
            jax.ShapeDtypeStruct((n_pad, f_out), jnp.bfloat16),
            jax.ShapeDtypeStruct((1, f_out), jnp.float32),
            jax.ShapeDtypeStruct((1, f_out), jnp.float32),
        ),
        compiler_params=pltpu.CompilerParams(
            # Stats accumulate across row tiles -> reduction axis, "arbitrary".
            dimension_semantics=("arbitrary",),
            vmem_limit_bytes=_VMEM_LIMIT),
        cost_estimate=pl.CostEstimate(
            flops=flops, transcendentals=0, bytes_accessed=bytes_acc),
    )(*inputs)


def _bn_scale_shift(ssum, ssq, gamma, beta, n_rows):
    """Fold training-mode BatchNorm1d (biased variance) into scale/shift."""
    inv_n = 1.0 / float(n_rows)
    mean = ssum * inv_n
    var = jnp.maximum(ssq * inv_n - mean * mean, 0.0)
    scale = gamma * jax.lax.rsqrt(var + BN_EPS)
    shift = beta - mean * scale
    return scale, shift


@functools.partial(jax.jit, static_argnames=("dim_inp",))
def mlpnet_forward(x, params, *, dim_inp):
    """params = dict with w1,g1,b1,w2,g2,b2,w3,g3,b3,w4,bias (all f32)."""
    x2d = x.reshape(-1, dim_inp).astype(jnp.float32)   # x.view(-1, dim_inp)
    n = x2d.shape[0]
    h0 = params["w1"].shape[0]
    h1 = params["w2"].shape[0]
    h2 = params["w3"].shape[0]
    dim_out = params["w4"].shape[0]

    tm = min(_TM_MAX, _round_up(n, 16))       # multiple of 16: f32 & bf16 tiles
    n_pad = _round_up(n, tm)
    d_in_pad = _round_up(dim_inp, _LANE)      # lane-dense input features
    d_out_pad = _round_up(dim_out, _LANE)     # lane-dense output features

    # Row- and lane-padded input (zeros -> exact matmul / stats).
    x_p = jnp.zeros((n_pad, d_in_pad), jnp.float32).at[:n, :dim_inp].set(x2d)

    # Weights: PyTorch [out, in] layout, cast to bf16 for the MXU.
    w1 = (jnp.zeros((h0, d_in_pad), jnp.float32)
          .at[:, :dim_inp].set(params["w1"]).astype(jnp.bfloat16))
    w2 = params["w2"].astype(jnp.bfloat16)
    w3 = params["w3"].astype(jnp.bfloat16)
    w4 = (jnp.zeros((d_out_pad, h2), jnp.float32)
          .at[:dim_out, :].set(params["w4"]).astype(jnp.bfloat16))
    bias = jnp.zeros((1, d_out_pad), jnp.float32).at[:, :dim_out].set(
        params["bias"])

    def row_tiled(f):
        return pl.BlockSpec((tm, f), lambda i: (i, 0))

    def pinned(shape):
        return pl.BlockSpec(shape, lambda i: (0, 0))

    # --- Layer 1: Linear (no bias) + BN1 stat accumulation ------------------
    y1, s1, q1 = _linear_stats_call(
        _first_layer_kernel, (x_p, w1),
        [row_tiled(d_in_pad), pinned((h0, d_in_pad))],
        n_pad, tm, h0,
        flops=2 * n_pad * d_in_pad * h0,
        bytes_acc=n_pad * d_in_pad * 4 + h0 * d_in_pad * 2 + n_pad * h0 * 2)
    sc1, sh1 = _bn_scale_shift(s1, q1, params["g1"], params["b1"], n)

    # --- Layer 2: BN1+ReLU -> Linear -> BN2 stats ----------------------------
    mid = functools.partial(_mid_layer_kernel, n_rows=n, n_pad=n_pad, tm=tm)
    y2, s2, q2 = _linear_stats_call(
        mid, (y1, sc1, sh1, w2),
        [row_tiled(h0), pinned((1, h0)), pinned((1, h0)), pinned((h1, h0))],
        n_pad, tm, h1,
        flops=2 * n_pad * h0 * h1,
        bytes_acc=n_pad * h0 * 2 + h1 * h0 * 2 + n_pad * h1 * 2)
    sc2, sh2 = _bn_scale_shift(s2, q2, params["g2"], params["b2"], n)

    # --- Layer 3: BN2+ReLU -> Linear -> BN3 stats ----------------------------
    y3, s3, q3 = _linear_stats_call(
        mid, (y2, sc2, sh2, w3),
        [row_tiled(h1), pinned((1, h1)), pinned((1, h1)), pinned((h2, h1))],
        n_pad, tm, h2,
        flops=2 * n_pad * h1 * h2,
        bytes_acc=n_pad * h1 * 2 + h2 * h1 * 2 + n_pad * h2 * 2)
    sc3, sh3 = _bn_scale_shift(s3, q3, params["g3"], params["b3"], n)

    # --- Final: BN3+ReLU -> Linear(+bias), lane-dense padded output ----------
    out_p = pl.pallas_call(
        _final_layer_kernel,
        grid=(n_pad // tm,),
        in_specs=[row_tiled(h2), pinned((1, h2)), pinned((1, h2)),
                  pinned((d_out_pad, h2)), pinned((1, d_out_pad))],
        out_specs=pl.BlockSpec((tm, d_out_pad), lambda i: (i, 0)),
        out_shape=jax.ShapeDtypeStruct((n_pad, d_out_pad), jnp.float32),
        compiler_params=pltpu.CompilerParams(
            dimension_semantics=("parallel",),   # no cross-tile state here
            vmem_limit_bytes=_VMEM_LIMIT),
        cost_estimate=pl.CostEstimate(
            flops=2 * n_pad * h2 * d_out_pad, transcendentals=0,
            bytes_accessed=(n_pad * h2 * 2 + d_out_pad * h2 * 2
                            + n_pad * d_out_pad * 4)),
    )(y3, sc3, sh3, w4, bias)

    return out_p[:n, :dim_out]


# ---------------------------------------------------------------------------
# Params + reference + demo
# ---------------------------------------------------------------------------
def init_params(key, dim_inp, nhiddens, dim_out):
    """Matches MLPNet.__init__/param_init: Linear ~ N(0, 1e-4), BN gamma=1
    beta=0, final fc bias ~ U(-1/sqrt(fan_in), 1/sqrt(fan_in))."""
    keys = jax.random.split(key, 5)
    h0, h1, h2 = nhiddens
    params = {}
    params["w1"] = 1e-4 * jax.random.normal(keys[0], (h0, dim_inp), jnp.float32)
    params["w2"] = 1e-4 * jax.random.normal(keys[1], (h1, h0), jnp.float32)
    params["w3"] = 1e-4 * jax.random.normal(keys[2], (h2, h1), jnp.float32)
    params["w4"] = 1e-4 * jax.random.normal(keys[3], (dim_out, h2), jnp.float32)
    for i, h in enumerate((h0, h1, h2), start=1):
        params[f"g{i}"] = jnp.ones((1, h), jnp.float32)
        params[f"b{i}"] = jnp.zeros((1, h), jnp.float32)
    bound = 1.0 / (h2 ** 0.5)
    params["bias"] = jax.random.uniform(
        keys[4], (1, dim_out), jnp.float32, minval=-bound, maxval=bound)
    return params


def mlpnet_reference(x, params, dim_inp):
    """Pure-JAX f32 reference (training-mode BN, biased variance)."""
    h = x.reshape(-1, dim_inp).astype(jnp.float32)
    for i in range(1, 4):
        y = h @ params[f"w{i}"].T
        mean = jnp.mean(y, axis=0, keepdims=True)
        var = jnp.mean((y - mean) ** 2, axis=0, keepdims=True)
        y = (y - mean) * jax.lax.rsqrt(var + BN_EPS)
        y = y * params[f"g{i}"] + params[f"b{i}"]
        h = jnp.maximum(y, 0.0)
    return h @ params["w4"].T + params["bias"]


if __name__ == "__main__":
    # Shapes consistent with MLPNet: dim_inp=16, nhiddens=(128,128,128),
    # dim_out=8.  Input (2, 5, 16) flattens to (10, 16) via view(-1, dim_inp);
    # N=10 also exercises the row-padding/masking path.
    dim_inp = 16
    nhiddens = (128, 128, 128)
    dim_out = 8

    key = jax.random.PRNGKey(0)
    kx, kp = jax.random.split(key)
    x = jax.random.normal(kx, (2, 5, dim_inp), jnp.float32)
    params = init_params(kp, dim_inp, nhiddens, dim_out)

    out = mlpnet_forward(x, params, dim_inp=dim_inp)
    jax.block_until_ready(out)
    assert out.shape == (10, dim_out), out.shape

    ref = mlpnet_reference(x, params, dim_inp)
    np.testing.assert_allclose(np.asarray(out), np.asarray(ref),
                               atol=1e-2, rtol=5e-2)
    print("KERNEL_OK")
</pallas_src>

<mosaic_0001>
module attributes {stable_mosaic.version = 11 : i64} {
  func.func @_first_layer_kernel(%arg0: i32, %arg1: memref<16x128xf32, #tpu.memory_space<vmem>>, %arg2: memref<128x128xbf16, #tpu.memory_space<vmem>>, %arg3: memref<16x128xbf16, #tpu.memory_space<vmem>>, %arg4: memref<1x128xf32, #tpu.memory_space<vmem>>, %arg5: memref<1x128xf32, #tpu.memory_space<vmem>>) attributes {dimension_semantics = [#tpu.dimension_semantics<arbitrary>], iteration_bounds = array<i64: 1>, scalar_prefetch = 0 : i64, scratch_operands = 0 : i64, tpu.core_type = #tpu.core_type<tc>, window_params = [{transform_indices = @transform_0, window_bounds = array<i64: 16, 128>}, {pipeline_mode = #tpu.pipeline_mode<synchronous>, transform_indices = @transform_1, window_bounds = array<i64: 128, 128>}, {transform_indices = @transform_2, window_bounds = array<i64: 16, 128>}, {pipeline_mode = #tpu.pipeline_mode<synchronous>, transform_indices = @transform_3, window_bounds = array<i64: 1, 128>}, {pipeline_mode = #tpu.pipeline_mode<synchronous>, transform_indices = @transform_4, window_bounds = array<i64: 1, 128>}]} {
    %c0_i32 = arith.constant 0 : i32
    %0 = arith.cmpi eq, %arg0, %c0_i32 : i32
    %1 = arith.extui %0 : i1 to i32
    %c0_i32_0 = arith.constant 0 : i32
    %2 = arith.cmpi ne, %1, %c0_i32_0 : i32
    scf.if %2 {
      %cst_16 = arith.constant 0.000000e+00 : f32
      %20 = vector.broadcast %cst_16 : f32 to vector<1x128xf32>
      %c0_17 = arith.constant 0 : index
      %c0_18 = arith.constant 0 : index
      %21 = vector.load %arg4[%c0_17, %c0_18] : memref<1x128xf32, #tpu.memory_space<vmem>>, vector<1x128xf32>
      tpu.vector_store %arg4[%c0_17, %c0_18], %20 {strides = array<i32>} : memref<1x128xf32, #tpu.memory_space<vmem>>, vector<1x128xf32>,
      %cst_19 = arith.constant 0.000000e+00 : f32
      %22 = vector.broadcast %cst_19 : f32 to vector<1x128xf32>
      %c0_20 = arith.constant 0 : index
      %c0_21 = arith.constant 0 : index
      %23 = vector.load %arg5[%c0_20, %c0_21] : memref<1x128xf32, #tpu.memory_space<vmem>>, vector<1x128xf32>
      tpu.vector_store %arg5[%c0_20, %c0_21], %22 {strides = array<i32>} : memref<1x128xf32, #tpu.memory_space<vmem>>, vector<1x128xf32>,
    } else {
    }
    %c0 = arith.constant 0 : index
    %c0_1 = arith.constant 0 : index
    %3 = vector.load %arg1[%c0, %c0_1] : memref<16x128xf32, #tpu.memory_space<vmem>>, vector<16x128xf32>
    %4 = arith.truncf %3 : vector<16x128xf32> to vector<16x128xbf16>
    %c0_2 = arith.constant 0 : index
    %c0_3 = arith.constant 0 : index
    %5 = vector.load %arg2[%c0_2, %c0_3] : memref<128x128xbf16, #tpu.memory_space<vmem>>, vector<128x128xbf16>
    %cst = arith.constant dense<0.000000e+00> : vector<16x128xf32>
    %6 = tpu.matmul %4, %5, %cst {dimension_numbers = #tpu.dot_dimension_numbers<[1], [1], [0], [0], [0, 0, 1, 0], [], []>} : vector<16x128xbf16>, vector<128x128xbf16>, vector<16x128xf32> -> vector<16x128xf32>
    %7 = arith.truncf %6 : vector<16x128xf32> to vector<16x128xbf16>
    %c0_4 = arith.constant 0 : index
    %c0_5 = arith.constant 0 : index
    %8 = vector.load %arg3[%c0_4, %c0_5] : memref<16x128xbf16, #tpu.memory_space<vmem>>, vector<16x128xbf16>
    tpu.vector_store %arg3[%c0_4, %c0_5], %7 {strides = array<i32>} : memref<16x128xbf16, #tpu.memory_space<vmem>>, vector<16x128xbf16>,
    %c0_6 = arith.constant 0 : index
    %c0_7 = arith.constant 0 : index
    %9 = vector.load %arg4[%c0_6, %c0_7] : memref<1x128xf32, #tpu.memory_space<vmem>>, vector<1x128xf32>
    %cst_8 = arith.constant dense<0.000000e+00> : vector<128xf32>
    %10 = vector.multi_reduction <add>, %6, %cst_8 [0] : vector<16x128xf32> to vector<128xf32>
    %11 = vector.shape_cast %10 : vector<128xf32> to vector<1x128xf32>
    %12 = arith.addf %9, %11 : vector<1x128xf32>
    %c0_9 = arith.constant 0 : index
    %c0_10 = arith.constant 0 : index
    %13 = vector.load %arg4[%c0_9, %c0_10] : memref<1x128xf32, #tpu.memory_space<vmem>>, vector<1x128xf32>
    tpu.vector_store %arg4[%c0_9, %c0_10], %12 {strides = array<i32>} : memref<1x128xf32, #tpu.memory_space<vmem>>, vector<1x128xf32>,
    %c0_11 = arith.constant 0 : index
    %c0_12 = arith.constant 0 : index
    %14 = vector.load %arg5[%c0_11, %c0_12] : memref<1x128xf32, #tpu.memory_space<vmem>>, vector<1x128xf32>
    %15 = arith.mulf %6, %6 : vector<16x128xf32>
    %cst_13 = arith.constant dense<0.000000e+00> : vector<128xf32>
    %16 = vector.multi_reduction <add>, %15, %cst_13 [0] : vector<16x128xf32> to vector<128xf32>
    %17 = vector.shape_cast %16 : vector<128xf32> to vector<1x128xf32>
    %18 = arith.addf %14, %17 : vector<1x128xf32>
    %c0_14 = arith.constant 0 : index
    %c0_15 = arith.constant 0 : index
    %19 = vector.load %arg5[%c0_14, %c0_15] : memref<1x128xf32, #tpu.memory_space<vmem>>, vector<1x128xf32>
    tpu.vector_store %arg5[%c0_14, %c0_15], %18 {strides = array<i32>} : memref<1x128xf32, #tpu.memory_space<vmem>>, vector<1x128xf32>,
    return
  }
  func.func @transform_0(%arg0: i32) -> (i32, i32) {
    %c0_i32 = arith.constant 0 : i32
    %c0_i32_0 = arith.constant 0 : i32
    return %arg0, %c0_i32 : i32, i32
  }
  func.func @transform_1(%arg0: i32) -> (i32, i32) {
    %c0_i32 = arith.constant 0 : i32
    %c0_i32_0 = arith.constant 0 : i32
    %c0_i32_1 = arith.constant 0 : i32
    return %c0_i32, %c0_i32_0 : i32, i32
  }
  func.func @transform_2(%arg0: i32) -> (i32, i32) {
    %c0_i32 = arith.constant 0 : i32
    %c0_i32_0 = arith.constant 0 : i32
    return %arg0, %c0_i32 : i32, i32
  }
  func.func @transform_3(%arg0: i32) -> (i32, i32) {
    %c0_i32 = arith.constant 0 : i32
    %c0_i32_0 = arith.constant 0 : i32
    %c0_i32_1 = arith.constant 0 : i32
    return %c0_i32, %c0_i32_0 : i32, i32
  }
  func.func @transform_4(%arg0: i32) -> (i32, i32) {
    %c0_i32 = arith.constant 0 : i32
    %c0_i32_0 = arith.constant 0 : i32
    %c0_i32_1 = arith.constant 0 : i32
    return %c0_i32, %c0_i32_0 : i32, i32
  }
}

module attributes {stable_mosaic.version = 11 : i64} {
  func.func @_mid_layer_kernel(%arg0: i32, %arg1: memref<16x128xbf16, #tpu.memory_space<vmem>>, %arg2: memref<1x128xf32, #tpu.memory_space<vmem>>, %arg3: memref<1x128xf32, #tpu.memory_space<vmem>>, %arg4: memref<128x128xbf16, #tpu.memory_space<vmem>>, %arg5: memref<16x128xbf16, #tpu.memory_space<vmem>>, %arg6: memref<1x128xf32, #tpu.memory_space<vmem>>, %arg7: memref<1x128xf32, #tpu.memory_space<vmem>>) attributes {dimension_semantics = [#tpu.dimension_semantics<arbitrary>], iteration_bounds = array<i64: 1>, scalar_prefetch = 0 : i64, scratch_operands = 0 : i64, tpu.core_type = #tpu.core_type<tc>, window_params = [{transform_indices = @transform_0, window_bounds = array<i64: 16, 128>}, {pipeline_mode = #tpu.pipeline_mode<synchronous>, transform_indices = @transform_1, window_bounds = array<i64: 1, 128>}, {pipeline_mode = #tpu.pipeline_mode<synchronous>, transform_indices = @transform_2, window_bounds = array<i64: 1, 128>}, {pipeline_mode = #tpu.pipeline_mode<synchronous>, transform_indices = @transform_3, window_bounds = array<i64: 128, 128>}, {transform_indices = @transform_4, window_bounds = array<i64: 16, 128>}, {pipeline_mode = #tpu.pipeline_mode<synchronous>, transform_indices = @transform_5, window_bounds = array<i64: 1, 128>}, {pipeline_mode = #tpu.pipeline_mode<synchronous>, transform_indices = @transform_6, window_bounds = array<i64: 1, 128>}]} {
    %c0_i32 = arith.constant 0 : i32
    %0 = arith.cmpi eq, %arg0, %c0_i32 : i32
    %1 = arith.extui %0 : i1 to i32
    %c0_i32_0 = arith.constant 0 : i32
    %2 = arith.cmpi ne, %1, %c0_i32_0 : i32
    scf.if %2 {
      %cst_22 = arith.constant 0.000000e+00 : f32
      %37 = vector.broadcast %cst_22 : f32 to vector<1x128xf32>
      %c0_23 = arith.constant 0 : index
      %c0_24 = arith.constant 0 : index
      %38 = vector.load %arg6[%c0_23, %c0_24] : memref<1x128xf32, #tpu.memory_space<vmem>>, vector<1x128xf32>
      tpu.vector_store %arg6[%c0_23, %c0_24], %37 {strides = array<i32>} : memref<1x128xf32, #tpu.memory_space<vmem>>, vector<1x128xf32>,
      %cst_25 = arith.constant 0.000000e+00 : f32
      %39 = vector.broadcast %cst_25 : f32 to vector<1x128xf32>
      %c0_26 = arith.constant 0 : index
      %c0_27 = arith.constant 0 : index
      %40 = vector.load %arg7[%c0_26, %c0_27] : memref<1x128xf32, #tpu.memory_space<vmem>>, vector<1x128xf32>
      tpu.vector_store %arg7[%c0_26, %c0_27], %39 {strides = array<i32>} : memref<1x128xf32, #tpu.memory_space<vmem>>, vector<1x128xf32>,
    } else {
    }
    %c0 = arith.constant 0 : index
    %c0_1 = arith.constant 0 : index
    %3 = vector.load %arg1[%c0, %c0_1] : memref<16x128xbf16, #tpu.memory_space<vmem>>, vector<16x128xbf16>
    %4 = arith.extf %3 : vector<16x128xbf16> to vector<16x128xf32>
    %c0_2 = arith.constant 0 : index
    %c0_3 = arith.constant 0 : index
    %5 = vector.load %arg2[%c0_2, %c0_3] : memref<1x128xf32, #tpu.memory_space<vmem>>, vector<1x128xf32>
    %6 = vector.broadcast %5 : vector<1x128xf32> to vector<16x128xf32>
    %7 = arith.mulf %4, %6 : vector<16x128xf32>
    %c0_4 = arith.constant 0 : index
    %c0_5 = arith.constant 0 : index
    %8 = vector.load %arg3[%c0_4, %c0_5] : memref<1x128xf32, #tpu.memory_space<vmem>>, vector<1x128xf32>
    %9 = vector.broadcast %8 : vector<1x128xf32> to vector<16x128xf32>
    %10 = arith.addf %7, %9 : vector<16x128xf32>
    %cst = arith.constant 0.000000e+00 : f32
    %11 = vector.broadcast %cst : f32 to vector<16x128xf32>
    %12 = arith.maximumf %10, %11 : vector<16x128xf32>
    %c16_i32 = arith.constant 16 : i32
    %13 = arith.muli %arg0, %c16_i32 : i32
    %14 = tpu.iota {dimensions = array<i32: 0>} : vector<16x128xi32>
    %15 = vector.broadcast %13 : i32 to vector<16x128xi32>
    %16 = arith.addi %15, %14 : vector<16x128xi32>
    %c10_i32 = arith.constant 10 : i32
    %17 = vector.broadcast %c10_i32 : i32 to vector<16x128xi32>
    %18 = arith.cmpi slt, %16, %17 : vector<16x128xi32>
    %cst_6 = arith.constant 0.000000e+00 : f32
    %19 = vector.broadcast %cst_6 : f32 to vector<16x128xf32>
    %20 = arith.select %18, %12, %19 : vector<16x128xi1>, vector<16x128xf32>
    %21 = arith.truncf %20 : vector<16x128xf32> to vector<16x128xbf16>
    %c0_7 = arith.constant 0 : index
    %c0_8 = arith.constant 0 : index
    %22 = vector.load %arg4[%c0_7, %c0_8] : memref<128x128xbf16, #tpu.memory_space<vmem>>, vector<128x128xbf16>
    %cst_9 = arith.constant dense<0.000000e+00> : vector<16x128xf32>
    %23 = tpu.matmul %21, %22, %cst_9 {dimension_numbers = #tpu.dot_dimension_numbers<[1], [1], [0], [0], [0, 0, 1, 0], [], []>} : vector<16x128xbf16>, vector<128x128xbf16>, vector<16x128xf32> -> vector<16x128xf32>
    %24 = arith.truncf %23 : vector<16x128xf32> to vector<16x128xbf16>
    %c0_10 = arith.constant 0 : index
    %c0_11 = arith.constant 0 : index
    %25 = vector.load %arg5[%c0_10, %c0_11] : memref<16x128xbf16, #tpu.memory_space<vmem>>, vector<16x128xbf16>
    tpu.vector_store %arg5[%c0_10, %c0_11], %24 {strides = array<i32>} : memref<16x128xbf16, #tpu.memory_space<vmem>>, vector<16x128xbf16>,
    %c0_12 = arith.constant 0 : index
    %c0_13 = arith.constant 0 : index
    %26 = vector.load %arg6[%c0_12, %c0_13] : memref<1x128xf32, #tpu.memory_space<vmem>>, vector<1x128xf32>
    %cst_14 = arith.constant dense<0.000000e+00> : vector<128xf32>
    %27 = vector.multi_reduction <add>, %23, %cst_14 [0] : vector<16x128xf32> to vector<128xf32>
    %28 = vector.shape_cast %27 : vector<128xf32> to vector<1x128xf32>
    %29 = arith.addf %26, %28 : vector<1x128xf32>
    %c0_15 = arith.constant 0 : index
    %c0_16 = arith.constant 0 : index
    %30 = vector.load %arg6[%c0_15, %c0_16] : memref<1x128xf32, #tpu.memory_space<vmem>>, vector<1x128xf32>
    tpu.vector_store %arg6[%c0_15, %c0_16], %29 {strides = array<i32>} : memref<1x128xf32, #tpu.memory_space<vmem>>, vector<1x128xf32>,
    %c0_17 = arith.constant 0 : index
    %c0_18 = arith.constant 0 : index
    %31 = vector.load %arg7[%c0_17, %c0_18] : memref<1x128xf32, #tpu.memory_space<vmem>>, vector<1x128xf32>
    %32 = arith.mulf %23, %23 : vector<16x128xf32>
    %cst_19 = arith.constant dense<0.000000e+00> : vector<128xf32>
    %33 = vector.multi_reduction <add>, %32, %cst_19 [0] : vector<16x128xf32> to vector<128xf32>
    %34 = vector.shape_cast %33 : vector<128xf32> to vector<1x128xf32>
    %35 = arith.addf %31, %34 : vector<1x128xf32>
    %c0_20 = arith.constant 0 : index
    %c0_21 = arith.constant 0 : index
    %36 = vector.load %arg7[%c0_20, %c0_21] : memref<1x128xf32, #tpu.memory_space<vmem>>, vector<1x128xf32>
    tpu.vector_store %arg7[%c0_20, %c0_21], %35 {strides = array<i32>} : memref<1x128xf32, #tpu.memory_space<vmem>>, vector<1x128xf32>,
    return
  }
  func.func @transform_0(%arg0: i32) -> (i32, i32) {
    %c0_i32 = arith.constant 0 : i32
    %c0_i32_0 = arith.constant 0 : i32
    return %arg0, %c0_i32 : i32, i32
  }
  func.func @transform_1(%arg0: i32) -> (i32, i32) {
    %c0_i32 = arith.constant 0 : i32
    %c0_i32_0 = arith.constant 0 : i32
    %c0_i32_1 = arith.constant 0 : i32
    return %c0_i32, %c0_i32_0 : i32, i32
  }
  func.func @transform_2(%arg0: i32) -> (i32, i32) {
    %c0_i32 = arith.constant 0 : i32
    %c0_i32_0 = arith.constant 0 : i32
    %c0_i32_1 = arith.constant 0 : i32
    return %c0_i32, %c0_i32_0 : i32, i32
  }
  func.func @transform_3(%arg0: i32) -> (i32, i32) {
    %c0_i32 = arith.constant 0 : i32
    %c0_i32_0 = arith.constant 0 : i32
    %c0_i32_1 = arith.constant 0 : i32
    return %c0_i32, %c0_i32_0 : i32, i32
  }
  func.func @transform_4(%arg0: i32) -> (i32, i32) {
    %c0_i32 = arith.constant 0 : i32
    %c0_i32_0 = arith.constant 0 : i32
    return %arg0, %c0_i32 : i32, i32
  }
  func.func @transform_5(%arg0: i32) -> (i32, i32) {
    %c0_i32 = arith.constant 0 : i32
    %c0_i32_0 = arith.constant 0 : i32
    %c0_i32_1 = arith.constant 0 : i32
    return %c0_i32, %c0_i32_0 : i32, i32
  }
  func.func @transform_6(%arg0: i32) -> (i32, i32) {
    %c0_i32 = arith.constant 0 : i32
    %c0_i32_0 = arith.constant 0 : i32
    %c0_i32_1 = arith.constant 0 : i32
    return %c0_i32, %c0_i32_0 : i32, i32
  }
}

module attributes {stable_mosaic.version = 11 : i64} {
  func.func @_final_layer_kernel(%arg0: i32, %arg1: memref<16x128xbf16, #tpu.memory_space<vmem>>, %arg2: memref<1x128xf32, #tpu.memory_space<vmem>>, %arg3: memref<1x128xf32, #tpu.memory_space<vmem>>, %arg4: memref<128x128xbf16, #tpu.memory_space<vmem>>, %arg5: memref<1x128xf32, #tpu.memory_space<vmem>>, %arg6: memref<16x128xf32, #tpu.memory_space<vmem>>) attributes {dimension_semantics = [#tpu.dimension_semantics<parallel>], iteration_bounds = array<i64: 1>, scalar_prefetch = 0 : i64, scratch_operands = 0 : i64, tpu.core_type = #tpu.core_type<tc>, window_params = [{transform_indices = @transform_0, window_bounds = array<i64: 16, 128>}, {pipeline_mode = #tpu.pipeline_mode<synchronous>, transform_indices = @transform_1, window_bounds = array<i64: 1, 128>}, {pipeline_mode = #tpu.pipeline_mode<synchronous>, transform_indices = @transform_2, window_bounds = array<i64: 1, 128>}, {pipeline_mode = #tpu.pipeline_mode<synchronous>, transform_indices = @transform_3, window_bounds = array<i64: 128, 128>}, {pipeline_mode = #tpu.pipeline_mode<synchronous>, transform_indices = @transform_4, window_bounds = array<i64: 1, 128>}, {transform_indices = @transform_5, window_bounds = array<i64: 16, 128>}]} {
    %c0 = arith.constant 0 : index
    %c0_0 = arith.constant 0 : index
    %0 = vector.load %arg1[%c0, %c0_0] : memref<16x128xbf16, #tpu.memory_space<vmem>>, vector<16x128xbf16>
    %1 = arith.extf %0 : vector<16x128xbf16> to vector<16x128xf32>
    %c0_1 = arith.constant 0 : index
    %c0_2 = arith.constant 0 : index
    %2 = vector.load %arg2[%c0_1, %c0_2] : memref<1x128xf32, #tpu.memory_space<vmem>>, vector<1x128xf32>
    %3 = vector.broadcast %2 : vector<1x128xf32> to vector<16x128xf32>
    %4 = arith.mulf %1, %3 : vector<16x128xf32>
    %c0_3 = arith.constant 0 : index
    %c0_4 = arith.constant 0 : index
    %5 = vector.load %arg3[%c0_3, %c0_4] : memref<1x128xf32, #tpu.memory_space<vmem>>, vector<1x128xf32>
    %6 = vector.broadcast %5 : vector<1x128xf32> to vector<16x128xf32>
    %7 = arith.addf %4, %6 : vector<16x128xf32>
    %cst = arith.constant 0.000000e+00 : f32
    %8 = vector.broadcast %cst : f32 to vector<16x128xf32>
    %9 = arith.maximumf %7, %8 : vector<16x128xf32>
    %10 = arith.truncf %9 : vector<16x128xf32> to vector<16x128xbf16>
    %c0_5 = arith.constant 0 : index
    %c0_6 = arith.constant 0 : index
    %11 = vector.load %arg4[%c0_5, %c0_6] : memref<128x128xbf16, #tpu.memory_space<vmem>>, vector<128x128xbf16>
    %cst_7 = arith.constant dense<0.000000e+00> : vector<16x128xf32>
    %12 = tpu.matmul %10, %11, %cst_7 {dimension_numbers = #tpu.dot_dimension_numbers<[1], [1], [0], [0], [0, 0, 1, 0], [], []>} : vector<16x128xbf16>, vector<128x128xbf16>, vector<16x128xf32> -> vector<16x128xf32>
    %c0_8 = arith.constant 0 : index
    %c0_9 = arith.constant 0 : index
    %13 = vector.load %arg5[%c0_8, %c0_9] : memref<1x128xf32, #tpu.memory_space<vmem>>, vector<1x128xf32>
    %14 = vector.broadcast %13 : vector<1x128xf32> to vector<16x128xf32>
    %15 = arith.addf %12, %14 : vector<16x128xf32>
    %c0_10 = arith.constant 0 : index
    %c0_11 = arith.constant 0 : index
    %16 = vector.load %arg6[%c0_10, %c0_11] : memref<16x128xf32, #tpu.memory_space<vmem>>, vector<16x128xf32>
    tpu.vector_store %arg6[%c0_10, %c0_11], %15 {strides = array<i32>} : memref<16x128xf32, #tpu.memory_space<vmem>>, vector<16x128xf32>,
    return
  }
  func.func @transform_0(%arg0: i32) -> (i32, i32) {
    %c0_i32 = arith.constant 0 : i32
    %c0_i32_0 = arith.constant 0 : i32
    return %arg0, %c0_i32 : i32, i32
  }
  func.func @transform_1(%arg0: i32) -> (i32, i32) {
    %c0_i32 = arith.constant 0 : i32
    %c0_i32_0 = arith.constant 0 : i32
    %c0_i32_1 = arith.constant 0 : i32
    return %c0_i32, %c0_i32_0 : i32, i32
  }
  func.func @transform_2(%arg0: i32) -> (i32, i32) {
    %c0_i32 = arith.constant 0 : i32
    %c0_i32_0 = arith.constant 0 : i32
    %c0_i32_1 = arith.constant 0 : i32
    return %c0_i32, %c0_i32_0 : i32, i32
  }
  func.func @transform_3(%arg0: i32) -> (i32, i32) {
    %c0_i32 = arith.constant 0 : i32
    %c0_i32_0 = arith.constant 0 : i32
    %c0_i32_1 = arith.constant 0 : i32
    return %c0_i32, %c0_i32_0 : i32, i32
  }
  func.func @transform_4(%arg0: i32) -> (i32, i32) {
    %c0_i32 = arith.constant 0 : i32
    %c0_i32_0 = arith.constant 0 : i32
    %c0_i32_1 = arith.constant 0 : i32
    return %c0_i32, %c0_i32_0 : i32, i32
  }
  func.func @transform_5(%arg0: i32) -> (i32, i32) {
    %c0_i32 = arith.constant 0 : i32
    %c0_i32_0 = arith.constant 0 : i32
    return %arg0, %c0_i32 : i32, i32
  }
}

</mosaic_0001>

<llo_original>
// kernel: mlpnet_forward.7
$region0: #{mlpnet_forward.7}
  #allocation0 [shape = 'u32[]', space=smem, size = 0x4, offset = 0x4, fixed_abs, tag = 'smem constant byte address 0x4 - core index']
  #allocation1 [shape = 'u32[72,128]{1,0:T(1,128)}', space=vmem, size = 0x9000, scoped, tag = 'internal scratch']
  %s0 = inlined_call_operand.vmem [shape: bf16[16,128], index: 0, kind: input, shape index: {}]
  %s1 = inlined_call_operand.vmem [shape: f32[1,128], index: 1, kind: input, shape index: {}]
  %s2 = inlined_call_operand.vmem [shape: f32[1,128], index: 2, kind: input, shape index: {}]
  %s3 = inlined_call_operand.vmem [shape: bf16[128,128], index: 3, kind: input, shape index: {}]
  %s4 = inlined_call_operand.vmem [shape: f32[1,128], index: 4, kind: input, shape index: {}]
  %s5 = inlined_call_operand.vmem [shape: f32[16,128], index: 5, kind: output, shape index: {}]
  %s6 = sld [smem:[#allocation0]]
  $region30: #{mlpnet_forward.7} parent=0
    _
  %s8 = ssub.s32 1, %s6
  %s9 = scalar_select 0, %s8, %s6
  // Predicated region
  $region2: #{mlpnet_forward.7} parent=0 // pred_check
    _
  $region3: #{mlpnet_forward.7} parent=0 // pred_check_branch
    %11 = sbr.rel (0) target = $region5
  $region4: #{mlpnet_forward.7} parent=0 // pred_region
    _
  $region5: #{mlpnet_forward.7} parent=0 // pred_fallthru
    _
  // Predicated region
  $region6: #{mlpnet_forward.7} parent=0 // pred_check
    _
  $region7: #{mlpnet_forward.7} parent=0 // pred_check_branch
    %13 = sbr.rel (0) target = $region9
  $region8: #{mlpnet_forward.7} parent=0 // pred_region
    _
  $region9: #{mlpnet_forward.7} parent=0 // pred_fallthru
    _
  // Predicated region
  $region10: #{mlpnet_forward.7} parent=0 // pred_check
    _
  $region11: #{mlpnet_forward.7} parent=0 // pred_check_branch
    %15 = sbr.rel (0) target = $region13
  $region12: #{mlpnet_forward.7} parent=0 // pred_region
    _
  $region13: #{mlpnet_forward.7} parent=0 // pred_fallthru
    _
  // Predicated region
  $region14: #{mlpnet_forward.7} parent=0 // pred_check
    _
  $region15: #{mlpnet_forward.7} parent=0 // pred_check_branch
    %17 = sbr.rel (0) target = $region17
  $region16: #{mlpnet_forward.7} parent=0 // pred_region
    _
  $region17: #{mlpnet_forward.7} parent=0 // pred_fallthru
    _
  // Predicated region
  $region18: #{mlpnet_forward.7} parent=0 // pred_check
    _
  $region19: #{mlpnet_forward.7} parent=0 // pred_check_branch
    %19 = sbr.rel (0) target = $region21
  $region20: #{mlpnet_forward.7} parent=0 // pred_region
    _
  $region21: #{mlpnet_forward.7} parent=0 // pred_fallthru
    _
  %v20 = vld [vmem:[%s0] sm:$0xf]
  %v21 = vld [vmem:[%s0 + $0x4] sm:$0xf]
  %v22 = vunpack.c.l.bf16 %v20
  %v23 = vunpack.c.l.bf16 %v21
  %v24 = vld [vmem:[%s1] sm:$0x1]
  %v26 = vperm.slane %v24, 0
  %v28 = vmul.f32 %v22, %v26
  %v29 = vmul.f32 %v23, %v26
  %v30 = vld [vmem:[%s2] sm:$0x1]
  %v32 = vperm.slane %v30, 0
  %v34 = vadd.f32 %v28, %v32
  %v35 = vadd.f32 %v29, %v32
  %v36 = vmax.f32 %v34, 0.0
  %v37 = vmax.f32 %v35, 0.0
  %v38 = vpack.c.bf16 %v37, %v36
  %v39 = vld [vmem:[%s3] sm:$0xf]
  %v40 = vld [vmem:[%s3 + $0x4] sm:$0xf]
  %v41 = vld [vmem:[%s3 + $0x8] sm:$0xf]
  %v42 = vld [vmem:[%s3 + $0xc] sm:$0xf]
  %v43 = vld [vmem:[%s3 + $0x10] sm:$0xf]
  %v44 = vld [vmem:[%s3 + $0x14] sm:$0xf]
  %v45 = vld [vmem:[%s3 + $0x18] sm:$0xf]
  %v46 = vld [vmem:[%s3 + $0x1c] sm:$0xf]
  %v47 = vld [vmem:[%s3 + $0x20] sm:$0xf]
  %v48 = vld [vmem:[%s3 + $0x24] sm:$0xf]
  %v49 = vld [vmem:[%s3 + $0x28] sm:$0xf]
  %v50 = vld [vmem:[%s3 + $0x2c] sm:$0xf]
  %v51 = vld [vmem:[%s3 + $0x30] sm:$0xf]
  %v52 = vld [vmem:[%s3 + $0x34] sm:$0xf]
  %v53 = vld [vmem:[%s3 + $0x38] sm:$0xf]
  %v54 = vld [vmem:[%s3 + $0x3c] sm:$0xf]
  %v55 = vld [vmem:[%s4] sm:$0x1]
  %v57 = vperm.slane %v55, 0
  %v75 = vunpack.c.l.b16 %v39
  %v76 = vunpack.c.l.b16 %v40
  %v77 = vunpack.c.l.b16 %v41
  %v78 = vunpack.c.l.b16 %v42
  %v79 = vunpack.c.l.b16 %v43
  %v80 = vunpack.c.l.b16 %v44
  %v81 = vunpack.c.l.b16 %v45
  %v82 = vunpack.c.l.b16 %v46
  %v83 = vunpack.c.l.b16 %v47
  %v84 = vunpack.c.l.b16 %v48
  %v85 = vunpack.c.l.b16 %v49
  %v86 = vunpack.c.l.b16 %v50
  %v87 = vunpack.c.l.b16 %v51
  %v88 = vunpack.c.l.b16 %v52
  %v89 = vunpack.c.l.b16 %v53
  %v90 = vunpack.c.l.b16 %v54
  %v91 = vpack.c.b16 %v76, %v75
  %v92 = vpack.c.b16 %v78, %v77
  %v93 = vpack.c.b16 %v80, %v79
  %v94 = vpack.c.b16 %v82, %v81
  %v95 = vpack.c.b16 %v84, %v83
  %v96 = vpack.c.b16 %v86, %v85
  %v97 = vpack.c.b16 %v88, %v87
  %v98 = vpack.c.b16 %v90, %v89
  %107 = vmatpush.bf16.xpose.msra.mxu0 %v98
  %108 = vmatpush.bf16.xpose.msra.mxu0 %v97
  %109 = vmatpush.bf16.xpose.msra.mxu0 %v96
  %110 = vmatpush.bf16.xpose.msra.mxu0 %v95
  %111 = vmatpush.bf16.xpose.msra.mxu0 %v94
  %112 = vmatpush.bf16.xpose.msra.mxu0 %v93
  %113 = vmatpush.bf16.xpose.msra.mxu0 %v92
  %114 = vmatpush.bf16.xpose.msra.mxu0 %v91
  %115 = vmatmul.bf16.gmra.mxu0 %v38
  %v116 = vpop.f32.mrf.mxu0
  %v117 = vadd.f32 %v57, %v116
  %v118 = vpop.f32.mrf.mxu0
  %v119 = vadd.f32 %v57, %v118
  %120 = vdwg.mxu0
  %121 = vst [vmem:[%s5] sm:$0xff] %v117
  %122 = vst [vmem:[%s5 + $0x8] sm:$0xff] %v119
  // Predicated region
  $region22: #{mlpnet_forward.7} parent=0 // pred_check
    _
  $region23: #{mlpnet_forward.7} parent=0 // pred_check_branch
    %124 = sbr.rel (0) target = $region25
  $region24: #{mlpnet_forward.7} parent=0 // pred_region
    _
  $region25: #{mlpnet_forward.7} parent=0 // pred_fallthru
    _
  // Predicated region
  $region26: #{mlpnet_forward.7} parent=0 // pred_check
    _
  $region27: #{mlpnet_forward.7} parent=0 // pred_check_branch
    %126 = sbr.rel (0) target = $region29
  $region28: #{mlpnet_forward.7} parent=0 // pred_region
    _
  $region29: #{mlpnet_forward.7} parent=0 // pred_fallthru
    _

// kernel: mlpnet_forward.4
$region0: #{mlpnet_forward.4}
  #allocation0 [shape = 'u32[]', space=smem, size = 0x4, offset = 0x4, fixed_abs, tag = 'smem constant byte address 0x4 - core index']
  #allocation1 [shape = 'u32[72,128]{1,0:T(1,128)}', space=vmem, size = 0x9000, scoped, tag = 'internal scratch']
  %s0 = inlined_call_operand.vmem [shape: f32[16,128], index: 0, kind: input, shape index: {}]
  %s1 = inlined_call_operand.vmem [shape: bf16[128,128], index: 1, kind: input, shape index: {}]
  %s2 = inlined_call_operand.vmem [shape: bf16[16,128], index: 2, kind: output, shape index: {0}]
  %s3 = inlined_call_operand.vmem [shape: f32[1,128], index: 3, kind: output, shape index: {1}]
  %s4 = inlined_call_operand.vmem [shape: f32[1,128], index: 4, kind: output, shape index: {2}]
  %5 = xla_tuple %s2, %s3, %s4
  %s6 = sld [smem:[#allocation0]]
  $region38: #{mlpnet_forward.4} parent=0
    _
  %s8 = ssub.s32 1, %s6
  %s9 = scalar_select 0, %s8, %s6
  // Predicated region
  $region2: #{mlpnet_forward.4} parent=0 // pred_check
    _
  $region3: #{mlpnet_forward.4} parent=0 // pred_check_branch
    %11 = sbr.rel (0) target = $region5
  $region4: #{mlpnet_forward.4} parent=0 // pred_region
    _
  $region5: #{mlpnet_forward.4} parent=0 // pred_fallthru
    _
  // Predicated region
  $region6: #{mlpnet_forward.4} parent=0 // pred_check
    _
  $region7: #{mlpnet_forward.4} parent=0 // pred_check_branch
    %13 = sbr.rel (0) target = $region9
  $region8: #{mlpnet_forward.4} parent=0 // pred_region
    _
  $region9: #{mlpnet_forward.4} parent=0 // pred_fallthru
    _
  %p14 = scmp.eq.s32.totalorder 0, 0
  // Predicated region
  $region10: #{mlpnet_forward.4} parent=0 // pred_check
    %p15 = pneg %p14
  $region11: #{mlpnet_forward.4} parent=0 // pred_check_branch
    %17 = sbr.rel (%p15) target = $region13
  $region12: #{mlpnet_forward.4} parent=0 // pred_region
    %18 = vst [vmem:[%s3] sm:$0x1] 0.0
    %19 = vst [vmem:[%s4] sm:$0x1] 0.0
  $region13: #{mlpnet_forward.4} parent=0 // pred_fallthru
    _
  %v20 = vld [vmem:[%s0] sm:$0xff]
  %v21 = vld [vmem:[%s0 + $0x8] sm:$0xff]
  %v22 = vpack.c.bf16 %v21, %v20
  %v23 = vld [vmem:[%s1] sm:$0xf]
  %v24 = vld [vmem:[%s1 + $0x4] sm:$0xf]
  %v25 = vld [vmem:[%s1 + $0x8] sm:$0xf]
  %v26 = vld [vmem:[%s1 + $0xc] sm:$0xf]
  %v27 = vld [vmem:[%s1 + $0x10] sm:$0xf]
  %v28 = vld [vmem:[%s1 + $0x14] sm:$0xf]
  %v29 = vld [vmem:[%s1 + $0x18] sm:$0xf]
  %v30 = vld [vmem:[%s1 + $0x1c] sm:$0xf]
  %v31 = vld [vmem:[%s1 + $0x20] sm:$0xf]
  %v32 = vld [vmem:[%s1 + $0x24] sm:$0xf]
  %v33 = vld [vmem:[%s1 + $0x28] sm:$0xf]
  %v34 = vld [vmem:[%s1 + $0x2c] sm:$0xf]
  %v35 = vld [vmem:[%s1 + $0x30] sm:$0xf]
  %v36 = vld [vmem:[%s1 + $0x34] sm:$0xf]
  %v37 = vld [vmem:[%s1 + $0x38] sm:$0xf]
  %v38 = vld [vmem:[%s1 + $0x3c] sm:$0xf]
  %v55 = vunpack.c.l.b16 %v23
  %v56 = vunpack.c.l.b16 %v24
  %v57 = vunpack.c.l.b16 %v25
  %v58 = vunpack.c.l.b16 %v26
  %v59 = vunpack.c.l.b16 %v27
  %v60 = vunpack.c.l.b16 %v28
  %v61 = vunpack.c.l.b16 %v29
  %v62 = vunpack.c.l.b16 %v30
  %v63 = vunpack.c.l.b16 %v31
  %v64 = vunpack.c.l.b16 %v32
  %v65 = vunpack.c.l.b16 %v33
  %v66 = vunpack.c.l.b16 %v34
  %v67 = vunpack.c.l.b16 %v35
  %v68 = vunpack.c.l.b16 %v36
  %v69 = vunpack.c.l.b16 %v37
  %v70 = vunpack.c.l.b16 %v38
  %v71 = vpack.c.b16 %v56, %v55
  %v72 = vpack.c.b16 %v58, %v57
  %v73 = vpack.c.b16 %v60, %v59
  %v74 = vpack.c.b16 %v62, %v61
  %v75 = vpack.c.b16 %v64, %v63
  %v76 = vpack.c.b16 %v66, %v65
  %v77 = vpack.c.b16 %v68, %v67
  %v78 = vpack.c.b16 %v70, %v69
  %87 = vmatpush.bf16.xpose.msra.mxu0 %v78
  %88 = vmatpush.bf16.xpose.msra.mxu0 %v77
  %89 = vmatpush.bf16.xpose.msra.mxu0 %v76
  %90 = vmatpush.bf16.xpose.msra.mxu0 %v75
  %91 = vmatpush.bf16.xpose.msra.mxu0 %v74
  %92 = vmatpush.bf16.xpose.msra.mxu0 %v73
  %93 = vmatpush.bf16.xpose.msra.mxu0 %v72
  %94 = vmatpush.bf16.xpose.msra.mxu0 %v71
  %95 = vmatmul.bf16.gmra.mxu0 %v22
  %v96 = vpop.f32.mrf.mxu0
  %v97 = vadd.f32 0.0, %v96
  %v98 = vpop.f32.mrf.mxu0
  %v99 = vadd.f32 0.0, %v98
  %100 = vdwg.mxu0
  %v101 = vpack.c.bf16 %v97, %v97
  %v102 = vpack.c.bf16 %v99, %v99
  %103 = vst [vmem:[%s2] sm:$0xf] %v101
  %104 = vst [vmem:[%s2 + $0x4] sm:$0xf] %v102
  %v105 = vld [vmem:[%s3] sm:$0x1]
  %v106 = vadd.f32 %v97, %v99
  %v107 = vrot.slane %v106, 4
  %v108 = vadd.f32 %v106, %v107
  %v109 = vrot.slane %v108, 2
  %v110 = vadd.f32 %v108, %v109
  %v111 = vrot.slane %v110, 1
  %v112 = vadd.f32 %v110, %v111
  %v113 = vadd.f32 %v105, %v112
  %114 = vst [vmem:[%s3] sm:$0x1] %v113
  %v115 = vld [vmem:[%s4] sm:$0x1]
  %v116 = vmul.f32 %v97, %v97
  %v117 = vmul.f32 %v99, %v99
  %v118 = vadd.f32 %v116, %v117
  %v119 = vrot.slane %v118, 4
  %v120 = vadd.f32 %v118, %v119
  %v121 = vrot.slane %v120, 2
  %v122 = vadd.f32 %v120, %v121
  %v123 = vrot.slane %v122, 1
  %v124 = vadd.f32 %v122, %v123
  %v125 = vadd.f32 %v115, %v124
  %126 = vst [vmem:[%s4] sm:$0x1] %v125
  // Predicated region
  $region14: #{mlpnet_forward.4} parent=0 // pred_check
    _
  $region15: #{mlpnet_forward.4} parent=0 // pred_check_branch
    %128 = sbr.rel (0) target = $region17
  $region16: #{mlpnet_forward.4} parent=0 // pred_region
    _
  $region17: #{mlpnet_forward.4} parent=0 // pred_fallthru
    _
  // Predicated region
  $region18: #{mlpnet_forward.4} parent=0 // pred_check
    _
  $region19: #{mlpnet_forward.4} parent=0 // pred_check_branch
    %130 = sbr.rel (0) target = $region21
  $region20: #{mlpnet_forward.4} parent=0 // pred_region
    _
  $region21: #{mlpnet_forward.4} parent=0 // pred_fallthru
    _
  // Predicated region
  $region22: #{mlpnet_forward.4} parent=0 // pred_check
    _
  $region23: #{mlpnet_forward.4} parent=0 // pred_check_branch
    %132 = sbr.rel (0) target = $region25
  $region24: #{mlpnet_forward.4} parent=0 // pred_region
    _
  $region25: #{mlpnet_forward.4} parent=0 // pred_fallthru
    _
  // Predicated region
  $region26: #{mlpnet_forward.4} parent=0 // pred_check
    _
  $region27: #{mlpnet_forward.4} parent=0 // pred_check_branch
    %134 = sbr.rel (0) target = $region29
  $region28: #{mlpnet_forward.4} parent=0 // pred_region
    _
  $region29: #{mlpnet_forward.4} parent=0 // pred_fallthru
    _
  // Predicated region
  $region30: #{mlpnet_forward.4} parent=0 // pred_check
    _
  $region31: #{mlpnet_forward.4} parent=0 // pred_check_branch
    %136 = sbr.rel (0) target = $region33
  $region32: #{mlpnet_forward.4} parent=0 // pred_region
    _
  $region33: #{mlpnet_forward.4} parent=0 // pred_fallthru
    _
  // Predicated region
  $region34: #{mlpnet_forward.4} parent=0 // pred_check
    _
  $region35: #{mlpnet_forward.4} parent=0 // pred_check_branch
    %138 = sbr.rel (0) target = $region37
  $region36: #{mlpnet_forward.4} parent=0 // pred_region
    _
  $region37: #{mlpnet_forward.4} parent=0 // pred_fallthru
    _

// kernel: mlpnet_forward.5
$region0: #{mlpnet_forward.5}
  #allocation0 [shape = 'u32[]', space=smem, size = 0x4, offset = 0x4, fixed_abs, tag = 'smem constant byte address 0x4 - core index']
  #allocation1 [shape = 'u32[72,128]{1,0:T(1,128)}', space=vmem, size = 0x9000, scoped, tag = 'internal scratch']
  %s0 = inlined_call_operand.vmem [shape: bf16[16,128], index: 0, kind: input, shape index: {}]
  %s1 = inlined_call_operand.vmem [shape: f32[1,128], index: 1, kind: input, shape index: {}]
  %s2 = inlined_call_operand.vmem [shape: f32[1,128], index: 2, kind: input, shape index: {}]
  %s3 = inlined_call_operand.vmem [shape: bf16[128,128], index: 3, kind: input, shape index: {}]
  %s4 = inlined_call_operand.vmem [shape: bf16[16,128], index: 4, kind: output, shape index: {0}]
  %s5 = inlined_call_operand.vmem [shape: f32[1,128], index: 5, kind: output, shape index: {1}]
  %s6 = inlined_call_operand.vmem [shape: f32[1,128], index: 6, kind: output, shape index: {2}]
  %7 = xla_tuple %s4, %s5, %s6
  %s8 = sld [smem:[#allocation0]]
  $region46: #{mlpnet_forward.5} parent=0
    _
  %s10 = ssub.s32 1, %s8
  %s11 = scalar_select 0, %s10, %s8
  // Predicated region
  $region2: #{mlpnet_forward.5} parent=0 // pred_check
    _
  $region3: #{mlpnet_forward.5} parent=0 // pred_check_branch
    %13 = sbr.rel (0) target = $region5
  $region4: #{mlpnet_forward.5} parent=0 // pred_region
    _
  $region5: #{mlpnet_forward.5} parent=0 // pred_fallthru
    _
  // Predicated region
  $region6: #{mlpnet_forward.5} parent=0 // pred_check
    _
  $region7: #{mlpnet_forward.5} parent=0 // pred_check_branch
    %15 = sbr.rel (0) target = $region9
  $region8: #{mlpnet_forward.5} parent=0 // pred_region
    _
  $region9: #{mlpnet_forward.5} parent=0 // pred_fallthru
    _
  // Predicated region
  $region10: #{mlpnet_forward.5} parent=0 // pred_check
    _
  $region11: #{mlpnet_forward.5} parent=0 // pred_check_branch
    %17 = sbr.rel (0) target = $region13
  $region12: #{mlpnet_forward.5} parent=0 // pred_region
    _
  $region13: #{mlpnet_forward.5} parent=0 // pred_fallthru
    _
  // Predicated region
  $region14: #{mlpnet_forward.5} parent=0 // pred_check
    _
  $region15: #{mlpnet_forward.5} parent=0 // pred_check_branch
    %19 = sbr.rel (0) target = $region17
  $region16: #{mlpnet_forward.5} parent=0 // pred_region
    _
  $region17: #{mlpnet_forward.5} parent=0 // pred_fallthru
    _
  %p20 = scmp.eq.s32.totalorder 0, 0
  // Predicated region
  $region18: #{mlpnet_forward.5} parent=0 // pred_check
    %p21 = pneg %p20
  $region19: #{mlpnet_forward.5} parent=0 // pred_check_branch
    %23 = sbr.rel (%p21) target = $region21
  $region20: #{mlpnet_forward.5} parent=0 // pred_region
    %24 = vst [vmem:[%s5] sm:$0x1] 0.0
    %25 = vst [vmem:[%s6] sm:$0x1] 0.0
  $region21: #{mlpnet_forward.5} parent=0 // pred_fallthru
    _
  %v26 = vld [vmem:[%s0] sm:$0xf]
  %v27 = vld [vmem:[%s0 + $0x4] sm:$0xf]
  %v28 = vunpack.c.l.bf16 %v26
  %v29 = vunpack.c.l.bf16 %v27
  %v30 = vld [vmem:[%s1] sm:$0x1]
  %v32 = vperm.slane %v30, 0
  %v34 = vmul.f32 %v28, %v32
  %v35 = vmul.f32 %v29, %v32
  %v36 = vld [vmem:[%s2] sm:$0x1]
  %v38 = vperm.slane %v36, 0
  %v40 = vadd.f32 %v34, %v38
  %v41 = vadd.f32 %v35, %v38
  %v42 = vmax.f32 %v40, 0.0
  %v43 = vmax.f32 %v41, 0.0
  %s44 = smul.u32 0, 16
  %v45 = vlaneseq
  %v46 = vshrl.u32 %v45, 7
  %v47 = vadd.s32 %v46, 8
  %v48 = vstv %s44
  %v49 = vadd.s32 %v48, %v46
  %v50 = vadd.s32 %v48, %v47
  %vm51 = vcmp.lt.s32.totalorder %v49, 10
  %vm52 = vcmp.lt.s32.totalorder %v50, 10
  %v53 = vsel %vm51, %v42, 0.0
  %v54 = vsel %vm52, %v43, 0.0
  %v55 = vpack.c.bf16 %v54, %v53
  %v56 = vld [vmem:[%s3] sm:$0xf]
  %v57 = vld [vmem:[%s3 + $0x4] sm:$0xf]
  %v58 = vld [vmem:[%s3 + $0x8] sm:$0xf]
  %v59 = vld [vmem:[%s3 + $0xc] sm:$0xf]
  %v60 = vld [vmem:[%s3 + $0x10] sm:$0xf]
  %v61 = vld [vmem:[%s3 + $0x14] sm:$0xf]
  %v62 = vld [vmem:[%s3 + $0x18] sm:$0xf]
  %v63 = vld [vmem:[%s3 + $0x1c] sm:$0xf]
  %v64 = vld [vmem:[%s3 + $0x20] sm:$0xf]
  %v65 = vld [vmem:[%s3 + $0x24] sm:$0xf]
  %v66 = vld [vmem:[%s3 + $0x28] sm:$0xf]
  %v67 = vld [vmem:[%s3 + $0x2c] sm:$0xf]
  %v68 = vld [vmem:[%s3 + $0x30] sm:$0xf]
  %v69 = vld [vmem:[%s3 + $0x34] sm:$0xf]
  %v70 = vld [vmem:[%s3 + $0x38] sm:$0xf]
  %v71 = vld [vmem:[%s3 + $0x3c] sm:$0xf]
  %v88 = vunpack.c.l.b16 %v56
  %v89 = vunpack.c.l.b16 %v57
  %v90 = vunpack.c.l.b16 %v58
  %v91 = vunpack.c.l.b16 %v59
  %v92 = vunpack.c.l.b16 %v60
  %v93 = vunpack.c.l.b16 %v61
  %v94 = vunpack.c.l.b16 %v62
  %v95 = vunpack.c.l.b16 %v63
  %v96 = vunpack.c.l.b16 %v64
  %v97 = vunpack.c.l.b16 %v65
  %v98 = vunpack.c.l.b16 %v66
  %v99 = vunpack.c.l.b16 %v67
  %v100 = vunpack.c.l.b16 %v68
  %v101 = vunpack.c.l.b16 %v69
  %v102 = vunpack.c.l.b16 %v70
  %v103 = vunpack.c.l.b16 %v71
  %v104 = vpack.c.b16 %v89, %v88
  %v105 = vpack.c.b16 %v91, %v90
  %v106 = vpack.c.b16 %v93, %v92
  %v107 = vpack.c.b16 %v95, %v94
  %v108 = vpack.c.b16 %v97, %v96
  %v109 = vpack.c.b16 %v99, %v98
  %v110 = vpack.c.b16 %v101, %v100
  %v111 = vpack.c.b16 %v103, %v102
  %120 = vmatpush.bf16.xpose.msra.mxu0 %v111
  %121 = vmatpush.bf16.xpose.msra.mxu0 %v110
  %122 = vmatpush.bf16.xpose.msra.mxu0 %v109
  %123 = vmatpush.bf16.xpose.msra.mxu0 %v108
  %124 = vmatpush.bf16.xpose.msra.mxu0 %v107
  %125 = vmatpush.bf16.xpose.msra.mxu0 %v106
  %126 = vmatpush.bf16.xpose.msra.mxu0 %v105
  %127 = vmatpush.bf16.xpose.msra.mxu0 %v104
  %128 = vmatmul.bf16.gmra.mxu0 %v55
  %v129 = vpop.f32.mrf.mxu0
  %v130 = vadd.f32 0.0, %v129
  %v131 = vpop.f32.mrf.mxu0
  %v132 = vadd.f32 0.0, %v131
  %133 = vdwg.mxu0
  %v134 = vpack.c.bf16 %v130, %v130
  %v135 = vpack.c.bf16 %v132, %v132
  %136 = vst [vmem:[%s4] sm:$0xf] %v134
  %137 = vst [vmem:[%s4 + $0x4] sm:$0xf] %v135
  %v138 = vld [vmem:[%s5] sm:$0x1]
  %v139 = vadd.f32 %v130, %v132
  %v140 = vrot.slane %v139, 4
  %v141 = vadd.f32 %v139, %v140
  %v142 = vrot.slane %v141, 2
  %v143 = vadd.f32 %v141, %v142
  %v144 = vrot.slane %v143, 1
  %v145 = vadd.f32 %v143, %v144
  %v146 = vadd.f32 %v138, %v145
  %147 = vst [vmem:[%s5] sm:$0x1] %v146
  %v148 = vld [vmem:[%s6] sm:$0x1]
  %v149 = vmul.f32 %v130, %v130
  %v150 = vmul.f32 %v132, %v132
  %v151 = vadd.f32 %v149, %v150
  %v152 = vrot.slane %v151, 4
  %v153 = vadd.f32 %v151, %v152
  %v154 = vrot.slane %v153, 2
  %v155 = vadd.f32 %v153, %v154
  %v156 = vrot.slane %v155, 1
  %v157 = vadd.f32 %v155, %v156
  %v158 = vadd.f32 %v148, %v157
  %159 = vst [vmem:[%s6] sm:$0x1] %v158
  // Predicated region
  $region22: #{mlpnet_forward.5} parent=0 // pred_check
    _
  $region23: #{mlpnet_forward.5} parent=0 // pred_check_branch
    %161 = sbr.rel (0) target = $region25
  $region24: #{mlpnet_forward.5} parent=0 // pred_region
    _
  $region25: #{mlpnet_forward.5} parent=0 // pred_fallthru
    _
  // Predicated region
  $region26: #{mlpnet_forward.5} parent=0 // pred_check
    _
  $region27: #{mlpnet_forward.5} parent=0 // pred_check_branch
    %163 = sbr.rel (0) target = $region29
  $region28: #{mlpnet_forward.5} parent=0 // pred_region
    _
  $region29: #{mlpnet_forward.5} parent=0 // pred_fallthru
    _
  // Predicated region
  $region30: #{mlpnet_forward.5} parent=0 // pred_check
    _
  $region31: #{mlpnet_forward.5} parent=0 // pred_check_branch
    %165 = sbr.rel (0) target = $region33
  $region32: #{mlpnet_forward.5} parent=0 // pred_region
    _
  $region33: #{mlpnet_forward.5} parent=0 // pred_fallthru
    _
  // Predicated region
  $region34: #{mlpnet_forward.5} parent=0 // pred_check
    _
  $region35: #{mlpnet_forward.5} parent=0 // pred_check_branch
    %167 = sbr.rel (0) target = $region37
  $region36: #{mlpnet_forward.5} parent=0 // pred_region
    _
  $region37: #{mlpnet_forward.5} parent=0 // pred_fallthru
    _
  // Predicated region
  $region38: #{mlpnet_forward.5} parent=0 // pred_check
    _
  $region39: #{mlpnet_forward.5} parent=0 // pred_check_branch
    %169 = sbr.rel (0) target = $region41
  $region40: #{mlpnet_forward.5} parent=0 // pred_region
    _
  $region41: #{mlpnet_forward.5} parent=0 // pred_fallthru
    _
  // Predicated region
  $region42: #{mlpnet_forward.5} parent=0 // pred_check
    _
  $region43: #{mlpnet_forward.5} parent=0 // pred_check_branch
    %171 = sbr.rel (0) target = $region45
  $region44: #{mlpnet_forward.5} parent=0 // pred_region
    _
  $region45: #{mlpnet_forward.5} parent=0 // pred_fallthru
    _

</llo_original>
